<compile_context>
chip_gen: v5e
topology: v5e:2x2
jax: 0.10.0
libtpu: 0.0.40
codegen_flags: <defaults>
</compile_context>

<pallas_src>
import jax
import jax.numpy as jnp
from jax.experimental import pallas as pl
from jax.experimental.pallas import tpu as pltpu


def _round_up(x, m):
    return (x + m - 1) // m * m


# ---------------------------------------------------------------------------
# Pallas kernel: single fused affine   o = z @ W + b   (W, b pre-folded)
# ---------------------------------------------------------------------------
def _affine_kernel(z_ref, w_ref, b_ref, o_ref):
    o = jnp.dot(z_ref[...], w_ref[...], preferred_element_type=jnp.float32)
    # Epilogue (bias add + store) stays in f32 — cheap on all generations,
    # and avoids bf16 VPU emulation on v5e.
    o_ref[...] = (o + b_ref[...]).astype(o_ref.dtype)


def _choose_block_b(B, d_in, n_out_padded):
    """Pick a batch tile: big (HBM roofline), VMEM-safe, >=2 grid steps for big B."""
    # Double-buffered f32 z + output tiles must stay far below the v7x scoped
    # VMEM default (32 MiB); weights are tiny and resident.
    vmem_budget = 8 * 1024 * 1024
    bytes_per_row = 2 * 4 * (d_in + n_out_padded)      # 2 buffers, f32
    bb = min(512, max(8, (vmem_budget // bytes_per_row) // 8 * 8))
    if B >= 16:
        # Keep at least 2 grid iterations so the "parallel" batch axis can be
        # sharded across the 2 TensorCores on v7x.
        bb = min(bb, _round_up(pl.cdiv(B, 2), 8))
    else:
        bb = min(bb, _round_up(B, 8))
    return max(8, bb)


def local_st_decoder_forward(z, params, *, time_len, num_neighbors, d_recons):
    """z: (B, d_latent) float32 -> (B, time_len, num_neighbors, d_recons)."""
    B, D = z.shape
    w1, b1, w2, b2, w3, b3 = params
    dim_out = d_recons * num_neighbors * time_len
    assert w3.shape[1] == dim_out

    # --- Fold the identity-activation MLP into a single affine op (tiny
    #     matmuls, done once outside the kernel). ---
    w = w1 @ w2 @ w3                     # (D, dim_out)
    b = (b1 @ w2 + b2) @ w3 + b3         # (1, dim_out)

    # --- Lane-dense output: zero-pad columns up to a multiple of 128 so the
    #     kernel writes full, unmasked vector stores. ---
    n_pad = _round_up(dim_out, 128)
    if n_pad != dim_out:
        w = jnp.pad(w, ((0, 0), (0, n_pad - dim_out)))
        b = jnp.pad(b, ((0, 0), (0, n_pad - dim_out)))

    block_b = _choose_block_b(B, D, n_pad)
    grid = (pl.cdiv(B, block_b),)

    cost = pl.CostEstimate(
        flops=2 * B * D * n_pad,
        transcendentals=0,
        bytes_accessed=4 * (B * D + B * n_pad + D * n_pad + n_pad),
    )

    out = pl.pallas_call(
        _affine_kernel,
        out_shape=jax.ShapeDtypeStruct((B, n_pad), jnp.float32),
        grid_spec=pltpu.PrefetchScalarGridSpec(
            num_scalar_prefetch=0,
            grid=grid,
            in_specs=[
                pl.BlockSpec((block_b, D), lambda i: (i, 0)),   # z batch tile
                pl.BlockSpec((D, n_pad), lambda i: (0, 0)),     # fused W
                pl.BlockSpec((1, n_pad), lambda i: (0, 0)),     # fused b
            ],
            out_specs=pl.BlockSpec((block_b, n_pad), lambda i: (i, 0)),
        ),
        compiler_params=pltpu.CompilerParams(
            dimension_semantics=("parallel",)),
        cost_estimate=cost,
    )(z, w, b)

    out = out[:, :dim_out]
    return out.reshape(B, time_len, num_neighbors, d_recons)


# ---------------------------------------------------------------------------
# Deterministic parameter construction (PyTorch-Linear-like init)
# ---------------------------------------------------------------------------
def make_params(key, d_latent, dim_out, num_layers=3):
    in_dims = [d_latent] * num_layers
    out_dims = [d_latent] * (num_layers - 1) + [dim_out]
    params = []
    keys = jax.random.split(key, num_layers * 2)
    for li in range(num_layers):
        bound = 1.0 / jnp.sqrt(in_dims[li])
        w = jax.random.uniform(keys[2 * li], (in_dims[li], out_dims[li]),
                               jnp.float32, -bound, bound)
        bvec = jax.random.uniform(keys[2 * li + 1], (1, out_dims[li]),
                                  jnp.float32, -bound, bound)
        params += [w, bvec]
    return tuple(params)


def reference_forward(z, params, *, time_len, num_neighbors, d_recons):
    # Unfused 3-layer composition (matches the PyTorch module in eval mode).
    w1, b1, w2, b2, w3, b3 = params
    h = z @ w1 + b1
    h = h @ w2 + b2
    o = h @ w3 + b3
    return o.reshape(z.shape[0], time_len, num_neighbors, d_recons)


if __name__ == "__main__":
    # Small shapes consistent with the module.
    B = 8
    d_latent = 32
    num_neighbors = 4
    d_recons = 4
    time_len = 3
    dim_out = d_recons * num_neighbors * time_len  # 48

    key = jax.random.PRNGKey(0)
    kz, kp = jax.random.split(key)
    z = jax.random.normal(kz, (B, d_latent), jnp.float32)
    params = make_params(kp, d_latent, dim_out, num_layers=3)

    out = local_st_decoder_forward(
        z, params, time_len=time_len, num_neighbors=num_neighbors,
        d_recons=d_recons)
    out = jax.block_until_ready(out)

    ref = reference_forward(
        z, params, time_len=time_len, num_neighbors=num_neighbors,
        d_recons=d_recons)

    assert out.shape == (B, time_len, num_neighbors, d_recons), out.shape
    # Slightly looser tolerance than 1e-5: folding W1@W2@W3 reassociates the
    # f32 matmuls (K=32), which perturbs the last few ulps.
    assert jnp.allclose(out, ref, atol=1e-4, rtol=1e-4), "mismatch vs reference"
    print("KERNEL_OK")
</pallas_src>

<mosaic_0001>
module attributes {stable_mosaic.version = 11 : i64} {
  func.func @_affine_kernel(%arg0: i32, %arg1: memref<8x32xf32, #tpu.memory_space<vmem>>, %arg2: memref<32x128xf32, #tpu.memory_space<vmem>>, %arg3: memref<1x128xf32, #tpu.memory_space<vmem>>, %arg4: memref<8x128xf32, #tpu.memory_space<vmem>>) attributes {dimension_semantics = [#tpu.dimension_semantics<parallel>], iteration_bounds = array<i64: 1>, scalar_prefetch = 0 : i64, scratch_operands = 0 : i64, tpu.core_type = #tpu.core_type<tc>, window_params = [{transform_indices = @transform_0, window_bounds = array<i64: 8, 32>}, {pipeline_mode = #tpu.pipeline_mode<synchronous>, transform_indices = @transform_1, window_bounds = array<i64: 32, 128>}, {pipeline_mode = #tpu.pipeline_mode<synchronous>, transform_indices = @transform_2, window_bounds = array<i64: 1, 128>}, {transform_indices = @transform_3, window_bounds = array<i64: 8, 128>}]} {
    %c0 = arith.constant 0 : index
    %c0_0 = arith.constant 0 : index
    %0 = vector.load %arg1[%c0, %c0_0] : memref<8x32xf32, #tpu.memory_space<vmem>>, vector<8x32xf32>
    %c0_1 = arith.constant 0 : index
    %c0_2 = arith.constant 0 : index
    %1 = vector.load %arg2[%c0_1, %c0_2] : memref<32x128xf32, #tpu.memory_space<vmem>>, vector<32x128xf32>
    %cst = arith.constant dense<0.000000e+00> : vector<8x128xf32>
    %2 = tpu.matmul %0, %1, %cst {dimension_numbers = #tpu.dot_dimension_numbers<[1], [0], [0], [1], [0, 0, 1, 1], [], []>} : vector<8x32xf32>, vector<32x128xf32>, vector<8x128xf32> -> vector<8x128xf32>
    %c0_3 = arith.constant 0 : index
    %c0_4 = arith.constant 0 : index
    %3 = vector.load %arg3[%c0_3, %c0_4] : memref<1x128xf32, #tpu.memory_space<vmem>>, vector<1x128xf32>
    %4 = vector.broadcast %3 : vector<1x128xf32> to vector<8x128xf32>
    %5 = arith.addf %2, %4 : vector<8x128xf32>
    %c0_5 = arith.constant 0 : index
    %c0_6 = arith.constant 0 : index
    %6 = vector.load %arg4[%c0_5, %c0_6] : memref<8x128xf32, #tpu.memory_space<vmem>>, vector<8x128xf32>
    tpu.vector_store %arg4[%c0_5, %c0_6], %5 {strides = array<i32>} : memref<8x128xf32, #tpu.memory_space<vmem>>, vector<8x128xf32>,
    return
  }
  func.func @transform_0(%arg0: i32) -> (i32, i32) {
    %c0_i32 = arith.constant 0 : i32
    %c0_i32_0 = arith.constant 0 : i32
    return %arg0, %c0_i32 : i32, i32
  }
  func.func @transform_1(%arg0: i32) -> (i32, i32) {
    %c0_i32 = arith.constant 0 : i32
    %c0_i32_0 = arith.constant 0 : i32
    %c0_i32_1 = arith.constant 0 : i32
    return %c0_i32, %c0_i32_0 : i32, i32
  }
  func.func @transform_2(%arg0: i32) -> (i32, i32) {
    %c0_i32 = arith.constant 0 : i32
    %c0_i32_0 = arith.constant 0 : i32
    %c0_i32_1 = arith.constant 0 : i32
    return %c0_i32, %c0_i32_0 : i32, i32
  }
  func.func @transform_3(%arg0: i32) -> (i32, i32) {
    %c0_i32 = arith.constant 0 : i32
    %c0_i32_0 = arith.constant 0 : i32
    return %arg0, %c0_i32 : i32, i32
  }
}

</mosaic_0001>

<llo_original>
// kernel: tpu_custom_call.1
$region0: #{tpu_custom_call.1}
  #allocation0 [shape = 'u32[]', space=smem, size = 0x4, offset = 0x4, fixed_abs, tag = 'smem constant byte address 0x4 - core index']
  #allocation1 [shape = 'u32[72,128]{1,0:T(1,128)}', space=vmem, size = 0x9000, scoped, tag = 'internal scratch']
  %s0 = inlined_call_operand.hbm [shape: f32[8,32], index: 0, kind: input, shape index: {}]
  %s1 = inlined_call_operand.hbm [shape: f32[32,128], index: 1, kind: input, shape index: {}]
  %s2 = inlined_call_operand.vmem [shape: f32[1,128], index: 2, kind: input, shape index: {}]
  %s3 = inlined_call_operand.hbm [shape: f32[8,128], index: 3, kind: output, shape index: {}]
  %s4 = sld [smem:[#allocation0]]
  $region30: #{tpu_custom_call.1} parent=0
    _
  %s6 = ssub.s32 1, %s4
  %s7 = scalar_select 0, %s6, %s4
  $region1: #{tpu_custom_call.1} parent=0
    #allocation2 [shape = 'u8[4096]{0}', space=vmem, size = 0x1000, scoped, tag = 'input window, operand 0, single buffered']
    #allocation3 [shape = 's32[1]{0}', space=sflag, size = 0x4, scoped, tag = 'scoped memory for tpu_custom_call.1']
    #allocation4 [shape = 's32[1]{0}', space=sflag, size = 0x4, scoped, tag = 'scoped memory for tpu_custom_call.1']
    #allocation5 [shape = 'u8[16384]{0}', space=vmem, size = 0x4000, scoped, tag = 'input window, operand 1, single buffered']
    #allocation6 [shape = 's32[1]{0}', space=sflag, size = 0x4, scoped, tag = 'scoped memory for tpu_custom_call.1']
    #allocation7 [shape = 'u8[4096]{0}', space=vmem, size = 0x1000, scoped, tag = 'output window, operand 0, single buffered']
    %8 = vsyncpa [#allocation3], 0
    %9 = vsyncpa [#allocation6], 0
    %10 = vsyncpa [#allocation4], 0
    // Predicated region
    $region2: #{tpu_custom_call.1} parent=1 // pred_check
      _
    $region3: #{tpu_custom_call.1} parent=1 // pred_check_branch
      %12 = sbr.rel (0) target = $region5
    $region4: #{tpu_custom_call.1} parent=1 // pred_region
      %14 = vsyncadd [#allocation3], 0
      %s16 = sshll.u32 %s0, 4
      %s17 = int_to_ptr.hbm [resolvable:$true] %s16
      %s18 = sshll.u32 [#allocation2], 4
      %s19 = int_to_ptr.vmem [resolvable:$true] %s18
      %21 = dma.hbm_to_vmem [thread:$0]  %s17, 128, %s19, [#allocation3]
    $region5: #{tpu_custom_call.1} parent=1 // pred_fallthru
      _
    // Predicated region
    $region6: #{tpu_custom_call.1} parent=1 // pred_check
      _
    $region7: #{tpu_custom_call.1} parent=1 // pred_check_branch
      %23 = sbr.rel (0) target = $region9
    $region8: #{tpu_custom_call.1} parent=1 // pred_region
      %25 = vsyncadd [#allocation6], 0
      %s26 = sshll.u32 %s1, 4
      %s27 = int_to_ptr.hbm [resolvable:$true] %s26
      %s28 = sshll.u32 [#allocation5], 4
      %s29 = int_to_ptr.vmem [resolvable:$true] %s28
      %34 = dma.hbm_to_vmem [thread:$0]  %s27, 512, %s29, [#allocation6], 128, 128, 8
    $region9: #{tpu_custom_call.1} parent=1 // pred_fallthru
      _
    // Predicated region
    $region10: #{tpu_custom_call.1} parent=1 // pred_check
      _
    $region11: #{tpu_custom_call.1} parent=1 // pred_check_branch
      %36 = sbr.rel (0) target = $region13
    $region12: #{tpu_custom_call.1} parent=1 // pred_region
      _
    $region13: #{tpu_custom_call.1} parent=1 // pred_fallthru
      _
    // Predicated region
    $region14: #{tpu_custom_call.1} parent=1 // pred_check
      _
    $region15: #{tpu_custom_call.1} parent=1 // pred_check_branch
      %38 = sbr.rel (0) target = $region17
    $region16: #{tpu_custom_call.1} parent=1 // pred_region
      %40 = dma.done [#allocation3], 128
    $region17: #{tpu_custom_call.1} parent=1 // pred_fallthru
      _
    // Predicated region
    $region18: #{tpu_custom_call.1} parent=1 // pred_check
      _
    $region19: #{tpu_custom_call.1} parent=1 // pred_check_branch
      %42 = sbr.rel (0) target = $region21
    $region20: #{tpu_custom_call.1} parent=1 // pred_region
      %44 = dma.done [#allocation6], 512
    $region21: #{tpu_custom_call.1} parent=1 // pred_fallthru
      _
    %v45 = vld [vmem:[#allocation2] sm:$0xff]
    %v46 = vld [vmem:[#allocation5] sm:$0xff]
    %v47 = vld [vmem:[#allocation5 + $0x8] sm:$0xff]
    %v48 = vld [vmem:[#allocation5 + $0x10] sm:$0xff]
    %v49 = vld [vmem:[#allocation5 + $0x18] sm:$0xff]
    %v50 = vld [vmem:[%s2] sm:$0x1]
    %v52 = vperm.slane %v50, 0
    %vm54 = vcmask 261120
    %v56 = vsel %vm54, %v45, 0
    %58 = vmatpush.msra.mxu0 0.0
    %59 = vmatpush.msra.mxu0 0.0
    %60 = vmatpush.msra.mxu0 0.0
    %61 = vmatpush.msra.mxu0 0.0
    %62 = vmatpush.msra.mxu0 0.0
    %63 = vmatpush.msra.mxu0 0.0
    %64 = vmatpush.msra.mxu0 0.0
    %65 = vmatpush.msra.mxu0 0.0
    %66 = vmatpush.msra.mxu0 0.0
    %67 = vmatpush.msra.mxu0 0.0
    %68 = vmatpush.msra.mxu0 0.0
    %69 = vmatpush.msra.mxu0 0.0
    %70 = vmatpush.msra.mxu0 %v49
    %71 = vmatpush.msra.mxu0 %v48
    %72 = vmatpush.msra.mxu0 %v47
    %73 = vmatpush.msra.mxu0 %v46
    %74 = vmatmul.f32.gmra.mxu0 %v56
    %v75 = vpop.f32.mrf.mxu0
    %v76 = vadd.f32 %v52, %v75
    %77 = vdwg.mxu0
    %78 = vst [vmem:[#allocation7] sm:$0xff] %v76
    // Predicated region
    $region22: #{tpu_custom_call.1} parent=1 // pred_check
      _
    $region23: #{tpu_custom_call.1} parent=1 // pred_check_branch
      %80 = sbr.rel (0) target = $region25
    $region24: #{tpu_custom_call.1} parent=1 // pred_region
      %82 = vsyncadd [#allocation4], 0
      %s84 = sshll.u32 [#allocation7], 4
      %s85 = int_to_ptr.vmem [resolvable:$true] %s84
      %s86 = sshll.u32 %s3, 4
      %s87 = int_to_ptr.hbm [resolvable:$true] %s86
      %89 = dma.vmem_to_hbm [thread:$0]  %s85, 128, %s87, [#allocation4]
    $region25: #{tpu_custom_call.1} parent=1 // pred_fallthru
      _
    // Predicated region
    $region26: #{tpu_custom_call.1} parent=1 // pred_check
      _
    $region27: #{tpu_custom_call.1} parent=1 // pred_check_branch
      %91 = sbr.rel (0) target = $region29
    $region28: #{tpu_custom_call.1} parent=1 // pred_region
      %93 = dma.done [#allocation4], 128
    $region29: #{tpu_custom_call.1} parent=1 // pred_fallthru
      _
    %94 = vsyncpa [#allocation3], 1
    %95 = vsyncpa [#allocation6], 1
    %96 = vsyncpa [#allocation4], 1

</llo_original>
